<compile_context>
chip_gen: v7x
topology: tpu7x:2x2x1
jax: 0.10.0
libtpu: 0.0.40
codegen_flags: <defaults>
</compile_context>

<pallas_src>
import functools
import math

import jax
import jax.numpy as jnp
from jax.experimental import pallas as pl
from jax.experimental.pallas import tpu as pltpu


_LANE = 128
_TARGET_BLOCK_BYTES = 4 * 1024 * 1024   # aim for ~4 MiB per block


def _round_up(x, m):
    return (x + m - 1) // m * m


def _pick_tiles(B, F, itemsize):
    """Choose (row_tile, lane_tile, padded_feature_dim) for the (B, F) view."""
    # Row tile: largest power-of-two multiple of 8 (<= 1024) dividing B.
    # Fall back to the full batch: full-extent blocks are exempt from the
    # (8, 128) divisibility rule.
    if B % 8 == 0:
        tb = 8
        while tb * 2 <= min(B, 1024) and B % (tb * 2) == 0:
            tb *= 2
    else:
        tb = B
    # Lane tile: lane-dense (multiple of 128) and sized so one block is a few
    # MiB (amortizes per-grid-step overhead, keeps DMAs large). With default
    # double-buffering of input + output this stays well under the 32 MiB
    # scoped-VMEM default on v5e/v6e/v7x.
    target_elems = max(_LANE, _TARGET_BLOCK_BYTES // (itemsize * tb))
    tf = min(_round_up(F, _LANE), _round_up(target_elems, _LANE))
    f_pad = _round_up(F, tf)
    return tb, tf, f_pad


def _drop_path_kernel(u_ref, x_ref, o_ref, *, keep_prob):
    # u_ref: (tb, 1)  per-sample uniforms in [0, 1)
    # x_ref: (tb, tf) tile of flattened inputs
    # o_ref: (tb, tf)
    u = u_ref[...]
    mask = jnp.floor(keep_prob + u)            # exactly 0.0 or 1.0 per row
    scale = mask * (1.0 / keep_prob)           # (tb, 1), broadcasts over lanes
    o_ref[...] = (x_ref[...] * scale).astype(o_ref.dtype)


@functools.partial(jax.jit, static_argnames=("drop_prob", "training"))
def drop_path_pallas(x, key, *, drop_prob, training=True):
    """DropPath forward. x: (B, ...). Returns an array of the same shape."""
    if drop_prob == 0.0 or not training:
        # Same short-circuit as the PyTorch forward: identity, no kernel.
        return x

    keep_prob = 1.0 - drop_prob
    B = x.shape[0]
    F = math.prod(x.shape[1:])
    itemsize = jnp.dtype(x.dtype).itemsize

    # Per-sample uniforms: same draw shape as the PyTorch module (B, 1, ..., 1).
    u = jax.random.uniform(key, (B,) + (1,) * (x.ndim - 1), dtype=x.dtype)
    u2d = u.reshape(B, 1).astype(jnp.float32)

    x2d = x.reshape(B, F)
    tb, tf, f_pad = _pick_tiles(B, F, itemsize)
    if f_pad != F:
        x2d = jnp.pad(x2d, ((0, 0), (0, f_pad - F)))

    grid = (B // tb, f_pad // tf)
    kernel = functools.partial(_drop_path_kernel, keep_prob=keep_prob)

    out2d = pl.pallas_call(
        kernel,
        out_shape=jax.ShapeDtypeStruct((B, f_pad), x.dtype),
        grid_spec=pl.GridSpec(
            grid=grid,
            in_specs=[
                pl.BlockSpec((tb, 1), lambda i, j: (i, 0)),    # uniforms
                pl.BlockSpec((tb, tf), lambda i, j: (i, j)),   # x tile
            ],
            out_specs=pl.BlockSpec((tb, tf), lambda i, j: (i, j)),
        ),
        compiler_params=pltpu.CompilerParams(
            dimension_semantics=("parallel", "parallel"),
        ),
        cost_estimate=pl.CostEstimate(
            flops=3 * B * f_pad,                                  # add + floor + mul
            transcendentals=0,
            bytes_accessed=2 * B * f_pad * itemsize + B * 4,      # x in + out + uniforms
        ),
    )(u2d, x2d)

    if f_pad != F:
        out2d = out2d[:, :F]
    return out2d.reshape(x.shape)


def _reference_drop_path(x, key, *, drop_prob, training=True):
    """Pure-JAX mirror of the PyTorch DropPath forward."""
    if drop_prob == 0.0 or not training:
        return x
    keep_prob = 1.0 - drop_prob
    shape = (x.shape[0],) + (1,) * (x.ndim - 1)
    u = jax.random.uniform(key, shape, dtype=x.dtype)
    random_tensor = jnp.floor(keep_prob + u)
    return x / keep_prob * random_tensor


if __name__ == "__main__":
    # Small ViT-ish shapes: batch=2, tokens=8, embed dim=32.
    B, N, D = 2, 8, 32
    key = jax.random.PRNGKey(0)
    kx, kmask = jax.random.split(key)

    x = jax.random.normal(kx, (B, N, D), dtype=jnp.float32)
    drop_prob = 0.5   # keep_prob = 0.5 -> scaling is exact in f32

    # Training path (the one that actually launches the Pallas kernel).
    out = drop_path_pallas(x, kmask, drop_prob=drop_prob, training=True)
    out = jax.block_until_ready(out)
    ref = _reference_drop_path(x, kmask, drop_prob=drop_prob, training=True)
    assert out.shape == x.shape
    assert jnp.allclose(out, ref, atol=1e-6, rtol=1e-6), "mismatch vs reference (training)"

    # Inference / drop_prob == 0 paths are the identity, same as PyTorch.
    out_eval = drop_path_pallas(x, kmask, drop_prob=drop_prob, training=False)
    assert jnp.array_equal(jax.block_until_ready(out_eval), x)
    out_p0 = drop_path_pallas(x, kmask, drop_prob=0.0, training=True)
    assert jnp.array_equal(jax.block_until_ready(out_p0), x)

    print("KERNEL_OK")
</pallas_src>

<mosaic_0001>
module attributes {stable_mosaic.version = 11 : i64} {
  func.func @_drop_path_kernel(%arg0: i32, %arg1: i32, %arg2: memref<2x1xf32, #tpu.memory_space<vmem>>, %arg3: memref<2x256xf32, #tpu.memory_space<vmem>>, %arg4: memref<2x256xf32, #tpu.memory_space<vmem>>) attributes {dimension_semantics = [#tpu.dimension_semantics<parallel>, #tpu.dimension_semantics<parallel>], iteration_bounds = array<i64: 1, 1>, scalar_prefetch = 0 : i64, scratch_operands = 0 : i64, tpu.core_type = #tpu.core_type<tc>, window_params = [{transform_indices = @transform_0, window_bounds = array<i64: 2, 1>}, {transform_indices = @transform_1, window_bounds = array<i64: 2, 256>}, {transform_indices = @transform_2, window_bounds = array<i64: 2, 256>}]} {
    %c0 = arith.constant 0 : index
    %c0_0 = arith.constant 0 : index
    %0 = vector.load %arg2[%c0, %c0_0] : memref<2x1xf32, #tpu.memory_space<vmem>>, vector<2x1xf32>
    %cst = arith.constant 5.000000e-01 : f32
    %1 = vector.broadcast %cst : f32 to vector<2x1xf32>
    %2 = arith.addf %1, %0 : vector<2x1xf32>
    %3 = math.floor %2 : vector<2x1xf32>
    %cst_1 = arith.constant 2.000000e+00 : f32
    %4 = vector.broadcast %cst_1 : f32 to vector<2x1xf32>
    %5 = arith.mulf %3, %4 : vector<2x1xf32>
    %c0_2 = arith.constant 0 : index
    %c0_3 = arith.constant 0 : index
    %6 = vector.load %arg3[%c0_2, %c0_3] : memref<2x256xf32, #tpu.memory_space<vmem>>, vector<2x256xf32>
    %7 = vector.broadcast %5 : vector<2x1xf32> to vector<2x256xf32>
    %8 = arith.mulf %6, %7 : vector<2x256xf32>
    %c0_4 = arith.constant 0 : index
    %c0_5 = arith.constant 0 : index
    %9 = vector.load %arg4[%c0_4, %c0_5] : memref<2x256xf32, #tpu.memory_space<vmem>>, vector<2x256xf32>
    tpu.vector_store %arg4[%c0_4, %c0_5], %8 {strides = array<i32>} : memref<2x256xf32, #tpu.memory_space<vmem>>, vector<2x256xf32>,
    return
  }
  func.func @transform_0(%arg0: i32, %arg1: i32) -> (i32, i32) {
    %c0_i32 = arith.constant 0 : i32
    %c0_i32_0 = arith.constant 0 : i32
    return %arg0, %c0_i32 : i32, i32
  }
  func.func @transform_1(%arg0: i32, %arg1: i32) -> (i32, i32) {
    %c0_i32 = arith.constant 0 : i32
    return %arg0, %arg1 : i32, i32
  }
  func.func @transform_2(%arg0: i32, %arg1: i32) -> (i32, i32) {
    %c0_i32 = arith.constant 0 : i32
    return %arg0, %arg1 : i32, i32
  }
}

</mosaic_0001>

<llo_original>
// kernel: drop_path_pallas.1
$region0: #{drop_path_pallas.1}
  #allocation0 [shape = 'u32[]', space=smem, size = 0x4, offset = 0x4, fixed_abs, tag = 'smem constant byte address 0x4 - core index']
  #allocation1 [shape = 'u32[144,128]{1,0:T(1,128)}', space=vmem, size = 0x12000, scoped, tag = 'internal scratch']
  %s0 = inlined_call_operand.vmem [shape: f32[2,1], index: 0, kind: input, shape index: {}]
  %s1 = inlined_call_operand.vmem [shape: f32[2,256], index: 1, kind: input, shape index: {}]
  %s2 = inlined_call_operand.vmem [shape: f32[2,256], index: 2, kind: output, shape index: {}]
  %s3 = sld [smem:[#allocation0]]
  $region18: #{drop_path_pallas.1} parent=0
    _
  %s5 = ssub.s32 1, %s3
  %s6 = scalar_select 0, %s5, %s3
  // Predicated region
  $region2: #{drop_path_pallas.1} parent=0 // pred_check
    _
  $region3: #{drop_path_pallas.1} parent=0 // pred_check_branch
    %8 = sbr.rel (0) target = $region5
  $region4: #{drop_path_pallas.1} parent=0 // pred_region
    _
  $region5: #{drop_path_pallas.1} parent=0 // pred_fallthru
    _
  // Predicated region
  $region6: #{drop_path_pallas.1} parent=0 // pred_check
    _
  $region7: #{drop_path_pallas.1} parent=0 // pred_check_branch
    %10 = sbr.rel (0) target = $region9
  $region8: #{drop_path_pallas.1} parent=0 // pred_region
    _
  $region9: #{drop_path_pallas.1} parent=0 // pred_fallthru
    _
  %v11 = vld [vmem:[%s0] sm:$0x3]
  %v12 = vadd.f32 %v11, 0.5
  %v13 = vfloor.f32 %v12
  %v14 = vmul.f32 %v13, 2.0
  %v15 = vld [vmem:[%s1] sm:$0xf]
  %17 = vset.pattern.permute.xlu0 0
  %18 = vperm.xlu0 %17, %v14
  %v19 = vpop.permute.xlu0 %18
  %v21 = vunpack.c.l.s4 269488144
  %v22 = vunpack.c.0.s8 %v21
  %v23 = vlaneseq
  %v24 = vshrl.u32 %v23, 7
  %v25 = vsub.s32 %v22, %v24
  %v26 = vrot.slane %v19, %v25
  %v28 = vmul.f32 %v15, %v26
  %29 = vst [vmem:[%s2] sm:$0xf] %v28
  // Predicated region
  $region10: #{drop_path_pallas.1} parent=0 // pred_check
    _
  $region11: #{drop_path_pallas.1} parent=0 // pred_check_branch
    %31 = sbr.rel (0) target = $region13
  $region12: #{drop_path_pallas.1} parent=0 // pred_region
    _
  $region13: #{drop_path_pallas.1} parent=0 // pred_fallthru
    _
  // Predicated region
  $region14: #{drop_path_pallas.1} parent=0 // pred_check
    _
  $region15: #{drop_path_pallas.1} parent=0 // pred_check_branch
    %33 = sbr.rel (0) target = $region17
  $region16: #{drop_path_pallas.1} parent=0 // pred_region
    _
  $region17: #{drop_path_pallas.1} parent=0 // pred_fallthru
    _

</llo_original>
